<compile_context>
chip_gen: v6e
topology: v6e:2x2x1
jax: 0.10.0
libtpu: 0.0.40
codegen_flags: <defaults>
</compile_context>

<pallas_src>
import functools
import math

import jax
import jax.numpy as jnp
from jax.experimental import pallas as pl
from jax.experimental.pallas import tpu as pltpu

_NEG_BIG = -1e30   # bias for padded memory slots -> softmax prob exactly 0
_EPS = 1e-12


def _round_up(v, m):
    return ((v + m - 1) // m) * m


def _pad2d(a, rows, cols, fill=0.0):
    r, c = a.shape
    if r == rows and c == cols:
        return a
    return jnp.pad(a, ((0, rows - r), (0, cols - c)), constant_values=fill)


# --------------------------------------------------------------------------
# Hardware / feature queries (cached, cheap)
# --------------------------------------------------------------------------
@functools.lru_cache(maxsize=None)
def _vmem_capacity_bytes():
    """Per-core VMEM capacity (128 MiB v5e/v6e, 64 MiB v7x); conservative
    fallback if the query is unavailable on this build."""
    try:
        return int(pltpu.get_tpu_info().vmem_capacity_bytes)
    except Exception:
        return 64 << 20


@functools.lru_cache(maxsize=None)
def _single_buffered_weights_supported():
    """Probe whether pipeline_mode=pl.Buffered(1) on a constant-index_map input
    of the main pallas_call pipeline is supported AND numerically correct on
    this jax build.  If not, the forward falls back to default (double-
    buffered) weight specs."""
    if not hasattr(pl, "Buffered"):
        return False

    def probe_kernel(w_ref, x_ref, o_ref):
        o_ref[...] = x_ref[...] + w_ref[...]

    try:
        fn = pl.pallas_call(
            probe_kernel,
            out_shape=jax.ShapeDtypeStruct((16, 128), jnp.float32),
            grid=(2,),
            in_specs=[
                pl.BlockSpec((8, 128), lambda i: (0, 0),
                             pipeline_mode=pl.Buffered(1)),   # resident "weight"
                pl.BlockSpec((8, 128), lambda i: (i, 0)),     # pipelined input
            ],
            out_specs=pl.BlockSpec((8, 128), lambda i: (i, 0)),
        )
        w = jnp.ones((8, 128), jnp.float32)
        x = jnp.arange(16 * 128, dtype=jnp.float32).reshape(16, 128)
        res = jax.block_until_ready(fn(w, x))
        return bool(jnp.allclose(res, x + 1.0))
    except Exception:
        return False


# --------------------------------------------------------------------------
# Kernel
# --------------------------------------------------------------------------
def _memory_unit_kernel(x_ref, w1_ref, b1_ref, w2_ref, b2_ref,
                        out_ref, att_ref, *, shrink_thres):
    # x arrives in its HBM dtype (f32); cast to the MXU dtype in-kernel so the
    # wrapper needs no separate HBM cast pass (cast rides free VPU slack).
    x = x_ref[...].astype(w1_ref.dtype)                       # (TN, F_pad)

    # l1: (TN, F) @ (F, M) + (1, M)  -- MXU, f32 accumulation.
    logits = jnp.dot(x, w1_ref[...],
                     preferred_element_type=jnp.float32) + b1_ref[...]

    # Softmax over the memory dimension (padded slots carry -1e30 bias -> 0).
    # The row-sum reciprocal is only TN values per tile, so use an exact divide
    # (rows sum to 1 up to f32 rounding; no approx-recip drift downstream).
    m = jnp.max(logits, axis=1, keepdims=True)
    e = jnp.exp(logits - m)          # NOTE: could compute in bf16 on v6e/v7x if EUP-bound
    att = e * (1.0 / jnp.sum(e, axis=1, keepdims=True))

    if shrink_thres > 0:
        # hard_shrink_relu: relu(a - l) * a / (|a - l| + eps).  The per-element
        # reciprocal uses the EUP approx path (separate VLIW slot, ~free).
        shifted = att - shrink_thres
        att = (jnp.maximum(shifted, 0.0) * att
               * pl.reciprocal(jnp.abs(shifted) + _EPS, approx=True))
        # L1 re-normalization (att >= 0 by construction, so sum == sum|.|);
        # exact per-row divide.
        l1 = jnp.sum(att, axis=1, keepdims=True)
        att = att * (1.0 / jnp.maximum(l1, _EPS))

    att_ref[...] = att.astype(att_ref.dtype)

    # l2: (TN, M) @ (M, F) + (1, F)  -- MXU, f32 accumulation.
    out = jnp.dot(att.astype(w2_ref.dtype), w2_ref[...],
                  preferred_element_type=jnp.float32) + b2_ref[...]
    out_ref[...] = out.astype(out_ref.dtype)


# --------------------------------------------------------------------------
# One-time parameter preparation (transpose / pad / cast done once, not per call)
# --------------------------------------------------------------------------
def prepare_memory_unit_params(w1, b1, w2, b2, matmul_dtype=jnp.bfloat16):
    """w1: (mem_dim, fea_dim), b1: (mem_dim,), w2: (fea_dim, mem_dim), b2: (fea_dim,)
    (PyTorch nn.Linear layouts).  Returns padded, transposed, cast params."""
    mem_dim, fea_dim = w1.shape
    f_pad = _round_up(fea_dim, 128)
    m_pad = _round_up(mem_dim, 128)

    w1_t = _pad2d(jnp.asarray(w1, jnp.float32).T, f_pad, m_pad).astype(matmul_dtype)
    w2_t = _pad2d(jnp.asarray(w2, jnp.float32).T, m_pad, f_pad).astype(matmul_dtype)
    # Padded memory slots get a huge negative bias -> softmax prob exactly 0.
    b1_p = jnp.pad(jnp.asarray(b1, jnp.float32).reshape(1, mem_dim),
                   ((0, 0), (0, m_pad - mem_dim)), constant_values=_NEG_BIG)
    b2_p = jnp.pad(jnp.asarray(b2, jnp.float32).reshape(1, fea_dim),
                   ((0, 0), (0, f_pad - fea_dim)))
    return {"w1": w1_t, "b1": b1_p, "w2": w2_t, "b2": b2_p,
            "fea_dim": fea_dim, "mem_dim": mem_dim}


# --------------------------------------------------------------------------
# Row-tile selection
# --------------------------------------------------------------------------
def _choose_rows_tile(n_rows, per_row_bytes, resident_bytes, budget_bytes):
    """Pick TN (multiple of 16 for bf16 sublane packing):
      * target 512 rows (amortizes ~0.35us/step; ~85% of HBM roofline),
      * >=2 balanced grid steps whenever there are >=512 rows so both v7x
        TensorCores get work under dimension_semantics=("parallel",),
      * shrunk so resident weights + double-buffered x/out/att row tiles fit
        the per-generation VMEM budget,
      * rebalanced to minimize row padding."""
    n16 = _round_up(max(n_rows, 1), 16)
    tn = min(512, n16)
    if n16 >= 512:                                   # split for v7x megacore
        tn = min(tn, _round_up(-(-n16 // 2), 16))
    fit = ((budget_bytes - resident_bytes) // (2 * per_row_bytes)) // 16 * 16
    tn = max(min(tn, max(fit, 16)), 16)
    steps = -(-n16 // tn)                            # rebalance (less padding)
    tn = max(min(tn, _round_up(-(-n16 // steps), 16)), 16)
    return tn


# --------------------------------------------------------------------------
# Forward wrapper
# --------------------------------------------------------------------------
def memory_unit_forward(x, params, shrink_thres=0.0025,
                        out_dtype=jnp.bfloat16, att_dtype=jnp.bfloat16):
    """MemoryUnit forward.  Returns {'output', 'att'} like the PyTorch module.
    out_dtype/att_dtype default to bfloat16 (the matmuls are bf16 anyway and it
    halves HBM writeback); pass jnp.float32 to store full-precision outputs."""
    x = jnp.asarray(x)
    if x.dtype not in (jnp.float32, jnp.bfloat16):
        x = x.astype(jnp.float32)
    n, fea_dim = x.shape
    assert fea_dim == params["fea_dim"], "feature dim mismatch"
    mem_dim = params["mem_dim"]
    w1, b1, w2, b2 = params["w1"], params["b1"], params["w2"], params["b2"]
    f_pad, m_pad = w1.shape
    mm_bytes = jnp.dtype(w1.dtype).itemsize
    x_bytes = jnp.dtype(x.dtype).itemsize
    out_bytes = jnp.dtype(out_dtype).itemsize
    att_bytes = jnp.dtype(att_dtype).itemsize

    single_buf = _single_buffered_weights_supported()
    weight_buffers = 1 if single_buf else 2

    # ---- generation-aware VMEM budgeting --------------------------------
    vmem_cap = _vmem_capacity_bytes()
    budget = int(vmem_cap * 0.75)
    resident_bytes = (weight_buffers * 2 * f_pad * m_pad * mm_bytes   # W1^T, W2^T
                      + 2 * 4 * (f_pad + m_pad))                      # b1, b2 (f32)
    per_row_bytes = (f_pad * x_bytes          # x row tile (input, pipelined)
                     + f_pad * out_bytes      # output row tile
                     + m_pad * att_bytes)     # att row tile
    if resident_bytes + 2 * 16 * per_row_bytes > budget:
        # TODO(synk): mem_dim-tiled (K-split + online-softmax) path for memory
        # banks whose resident weights do not fit v7x's 64 MiB per-core VMEM.
        raise ValueError(
            f"MemoryUnit weights need {resident_bytes} B resident VMEM, which "
            f"exceeds the per-core budget of {budget} B; a mem_dim-tiled "
            f"kernel is required for this (mem_dim, fea_dim).")

    tn = _choose_rows_tile(n, per_row_bytes, resident_bytes, budget)
    n_pad = _round_up(n, tn)
    x_p = _pad2d(x, n_pad, f_pad)             # no dtype cast: kernel casts on load

    tile_bytes = 2 * tn * per_row_bytes       # double-buffered row tiles
    vmem_limit = int(min(vmem_cap,
                         max(int((resident_bytes + tile_bytes) * 1.15) + (2 << 20),
                             16 << 20)))

    cost = pl.CostEstimate(
        flops=4 * n_pad * f_pad * m_pad,              # two matmuls (2*N*F*M each)
        transcendentals=n_pad * m_pad,                # exp
        bytes_accessed=(n_pad * f_pad * (x_bytes + out_bytes)
                        + n_pad * m_pad * att_bytes
                        + 2 * f_pad * m_pad * mm_bytes
                        + 2 * 4 * (f_pad + m_pad)),
    )

    if single_buf:
        def _resident(shape):
            return pl.BlockSpec(shape, lambda i: (0, 0),
                                pipeline_mode=pl.Buffered(1))
    else:
        def _resident(shape):
            return pl.BlockSpec(shape, lambda i: (0, 0))

    kernel = functools.partial(_memory_unit_kernel,
                               shrink_thres=float(shrink_thres))

    # TODO(synk): sweep pipeline_mode=pl.Buffered(3) on the x spec for v7x if
    # profiling shows exposed DMA latency between short grid steps.
    out_p, att_p = pl.pallas_call(
        kernel,
        out_shape=(
            jax.ShapeDtypeStruct((n_pad, f_pad), out_dtype),
            jax.ShapeDtypeStruct((n_pad, m_pad), att_dtype),
        ),
        grid=(n_pad // tn,),
        in_specs=[
            pl.BlockSpec((tn, f_pad), lambda i: (i, 0)),   # x row tile (pipelined)
            _resident((f_pad, m_pad)),                     # W1^T (resident)
            pl.BlockSpec((1, m_pad), lambda i: (0, 0)),    # b1   (tiny)
            _resident((m_pad, f_pad)),                     # W2^T (resident)
            pl.BlockSpec((1, f_pad), lambda i: (0, 0)),    # b2   (tiny)
        ],
        out_specs=(
            pl.BlockSpec((tn, f_pad), lambda i: (i, 0)),   # output row tile
            pl.BlockSpec((tn, m_pad), lambda i: (i, 0)),   # att row tile
        ),
        compiler_params=pltpu.CompilerParams(
            dimension_semantics=("parallel",),             # megacore on v7x
            vmem_limit_bytes=vmem_limit),
        cost_estimate=cost,
    )(x_p, w1, b1, w2, b2)

    # Slice away row / lane padding.
    return {"output": out_p[:n, :fea_dim], "att": att_p[:n, :mem_dim]}


# --------------------------------------------------------------------------
# Demo / self-check
# --------------------------------------------------------------------------
def _init_linear(key, out_dim, in_dim):
    """torch.nn.Linear default init: U(-1/sqrt(in), 1/sqrt(in))."""
    kw, kb = jax.random.split(key)
    bound = 1.0 / math.sqrt(in_dim)
    w = jax.random.uniform(kw, (out_dim, in_dim), jnp.float32, -bound, bound)
    b = jax.random.uniform(kb, (out_dim,), jnp.float32, -bound, bound)
    return w, b


if __name__ == "__main__":
    key = jax.random.PRNGKey(0)
    k_x, k_l1, k_l2 = jax.random.split(key, 3)

    N, FEA_DIM, MEM_DIM = 8, 32, 16
    shrink_thres = 0.0025

    x = jax.random.normal(k_x, (N, FEA_DIM), jnp.float32)
    w1, b1 = _init_linear(k_l1, MEM_DIM, FEA_DIM)   # l1: fea_dim -> mem_dim
    w2, b2 = _init_linear(k_l2, FEA_DIM, MEM_DIM)   # l2: mem_dim -> fea_dim

    params = prepare_memory_unit_params(w1, b1, w2, b2)   # one-time prep
    result = memory_unit_forward(x, params, shrink_thres)
    jax.block_until_ready(result["output"])
    jax.block_until_ready(result["att"])

    # Pure-JAX reference using the same bf16 MXU precision as the kernel
    # (elementwise softmax/shrink/renorm math in f32).  Tolerances cover the
    # bf16 output stores and the approx reciprocal inside hard_shrink_relu.
    bf = jnp.bfloat16
    logits = jnp.dot(x.astype(bf), w1.T.astype(bf),
                     preferred_element_type=jnp.float32) + b1
    att_ref = jax.nn.softmax(logits, axis=1)
    shifted = att_ref - shrink_thres
    att_ref = jnp.maximum(shifted, 0.0) * att_ref / (jnp.abs(shifted) + 1e-12)
    att_ref = att_ref / jnp.maximum(
        jnp.sum(jnp.abs(att_ref), axis=1, keepdims=True), 1e-12)
    out_ref = jnp.dot(att_ref.astype(bf), w2.T.astype(bf),
                      preferred_element_type=jnp.float32) + b2

    att_k = result["att"].astype(jnp.float32)
    out_k = result["output"].astype(jnp.float32)
    assert att_k.shape == (N, MEM_DIM)
    assert out_k.shape == (N, FEA_DIM)
    assert jnp.allclose(att_k, att_ref, atol=1e-2, rtol=5e-2)
    assert jnp.allclose(out_k, out_ref, atol=2e-2, rtol=5e-2)

    print("KERNEL_OK")
</pallas_src>

<mosaic_0001>
module attributes {stable_mosaic.version = 11 : i64} {
  func.func @probe_kernel(%arg0: i32, %arg1: memref<8x128xf32, #tpu.memory_space<vmem>>, %arg2: memref<8x128xf32, #tpu.memory_space<vmem>>, %arg3: memref<8x128xf32, #tpu.memory_space<vmem>>) attributes {dimension_semantics = [#tpu.dimension_semantics<arbitrary>], iteration_bounds = array<i64: 2>, scalar_prefetch = 0 : i64, scratch_operands = 0 : i64, tpu.core_type = #tpu.core_type<tc>, window_params = [{pipeline_mode = #tpu.pipeline_mode<synchronous>, transform_indices = @transform_0, window_bounds = array<i64: 8, 128>}, {transform_indices = @transform_1, window_bounds = array<i64: 8, 128>}, {transform_indices = @transform_2, window_bounds = array<i64: 8, 128>}]} {
    %c0 = arith.constant 0 : index
    %c0_0 = arith.constant 0 : index
    %0 = vector.load %arg2[%c0, %c0_0] : memref<8x128xf32, #tpu.memory_space<vmem>>, vector<8x128xf32>
    %c0_1 = arith.constant 0 : index
    %c0_2 = arith.constant 0 : index
    %1 = vector.load %arg1[%c0_1, %c0_2] : memref<8x128xf32, #tpu.memory_space<vmem>>, vector<8x128xf32>
    %2 = arith.addf %0, %1 : vector<8x128xf32>
    %c0_3 = arith.constant 0 : index
    %c0_4 = arith.constant 0 : index
    %3 = vector.load %arg3[%c0_3, %c0_4] : memref<8x128xf32, #tpu.memory_space<vmem>>, vector<8x128xf32>
    tpu.vector_store %arg3[%c0_3, %c0_4], %2 {strides = array<i32>} : memref<8x128xf32, #tpu.memory_space<vmem>>, vector<8x128xf32>,
    return
  }
  func.func @transform_0(%arg0: i32) -> (i32, i32) {
    %c0_i32 = arith.constant 0 : i32
    %c0_i32_0 = arith.constant 0 : i32
    %c0_i32_1 = arith.constant 0 : i32
    return %c0_i32, %c0_i32_0 : i32, i32
  }
  func.func @transform_1(%arg0: i32) -> (i32, i32) {
    %c0_i32 = arith.constant 0 : i32
    %c0_i32_0 = arith.constant 0 : i32
    return %arg0, %c0_i32 : i32, i32
  }
  func.func @transform_2(%arg0: i32) -> (i32, i32) {
    %c0_i32 = arith.constant 0 : i32
    %c0_i32_0 = arith.constant 0 : i32
    return %arg0, %c0_i32 : i32, i32
  }
}

module attributes {stable_mosaic.version = 11 : i64} {
  func.func @_memory_unit_kernel(%arg0: i32, %arg1: memref<16x128xf32, #tpu.memory_space<vmem>>, %arg2: memref<128x128xbf16, #tpu.memory_space<vmem>>, %arg3: memref<1x128xf32, #tpu.memory_space<vmem>>, %arg4: memref<128x128xbf16, #tpu.memory_space<vmem>>, %arg5: memref<1x128xf32, #tpu.memory_space<vmem>>, %arg6: memref<16x128xbf16, #tpu.memory_space<vmem>>, %arg7: memref<16x128xbf16, #tpu.memory_space<vmem>>) attributes {dimension_semantics = [#tpu.dimension_semantics<parallel>], iteration_bounds = array<i64: 1>, scalar_prefetch = 0 : i64, scratch_operands = 0 : i64, tpu.core_type = #tpu.core_type<tc>, window_params = [{transform_indices = @transform_0, window_bounds = array<i64: 16, 128>}, {pipeline_mode = #tpu.pipeline_mode<synchronous>, transform_indices = @transform_1, window_bounds = array<i64: 128, 128>}, {pipeline_mode = #tpu.pipeline_mode<synchronous>, transform_indices = @transform_2, window_bounds = array<i64: 1, 128>}, {pipeline_mode = #tpu.pipeline_mode<synchronous>, transform_indices = @transform_3, window_bounds = array<i64: 128, 128>}, {pipeline_mode = #tpu.pipeline_mode<synchronous>, transform_indices = @transform_4, window_bounds = array<i64: 1, 128>}, {transform_indices = @transform_5, window_bounds = array<i64: 16, 128>}, {transform_indices = @transform_6, window_bounds = array<i64: 16, 128>}]} {
    %c0 = arith.constant 0 : index
    %c0_0 = arith.constant 0 : index
    %0 = vector.load %arg1[%c0, %c0_0] : memref<16x128xf32, #tpu.memory_space<vmem>>, vector<16x128xf32>
    %1 = arith.truncf %0 : vector<16x128xf32> to vector<16x128xbf16>
    %c0_1 = arith.constant 0 : index
    %c0_2 = arith.constant 0 : index
    %2 = vector.load %arg2[%c0_1, %c0_2] : memref<128x128xbf16, #tpu.memory_space<vmem>>, vector<128x128xbf16>
    %cst = arith.constant dense<0.000000e+00> : vector<16x128xf32>
    %3 = tpu.matmul %1, %2, %cst {dimension_numbers = #tpu.dot_dimension_numbers<[1], [0], [0], [1], [0, 0, 1, 1], [], []>} : vector<16x128xbf16>, vector<128x128xbf16>, vector<16x128xf32> -> vector<16x128xf32>
    %c0_3 = arith.constant 0 : index
    %c0_4 = arith.constant 0 : index
    %4 = vector.load %arg3[%c0_3, %c0_4] : memref<1x128xf32, #tpu.memory_space<vmem>>, vector<1x128xf32>
    %5 = vector.broadcast %4 : vector<1x128xf32> to vector<16x128xf32>
    %6 = arith.addf %3, %5 : vector<16x128xf32>
    %cst_5 = arith.constant dense<0xFF800000> : vector<16xf32>
    %7 = vector.multi_reduction <maximumf>, %6, %cst_5 [1] : vector<16x128xf32> to vector<16xf32>
    %8 = vector.shape_cast %7 : vector<16xf32> to vector<16x1xf32>
    %9 = vector.broadcast %8 : vector<16x1xf32> to vector<16x128xf32>
    %10 = arith.subf %6, %9 : vector<16x128xf32>
    %11 = math.exp %10 : vector<16x128xf32>
    %cst_6 = arith.constant dense<0.000000e+00> : vector<16xf32>
    %12 = vector.multi_reduction <add>, %11, %cst_6 [1] : vector<16x128xf32> to vector<16xf32>
    %13 = vector.shape_cast %12 : vector<16xf32> to vector<16x1xf32>
    %cst_7 = arith.constant 1.000000e+00 : f32
    %14 = vector.broadcast %cst_7 : f32 to vector<16x1xf32>
    %15 = arith.divf %14, %13 : vector<16x1xf32>
    %16 = vector.broadcast %15 : vector<16x1xf32> to vector<16x128xf32>
    %17 = arith.mulf %11, %16 : vector<16x128xf32>
    %cst_8 = arith.constant 2.500000e-03 : f32
    %18 = vector.broadcast %cst_8 : f32 to vector<16x128xf32>
    %19 = arith.subf %17, %18 : vector<16x128xf32>
    %cst_9 = arith.constant 0.000000e+00 : f32
    %20 = vector.broadcast %cst_9 : f32 to vector<16x128xf32>
    %21 = arith.maximumf %19, %20 : vector<16x128xf32>
    %22 = arith.mulf %21, %17 : vector<16x128xf32>
    %23 = math.absf %19 : vector<16x128xf32>
    %cst_10 = arith.constant 9.99999996E-13 : f32
    %24 = vector.broadcast %cst_10 : f32 to vector<16x128xf32>
    %25 = arith.addf %23, %24 : vector<16x128xf32>
    %26 = tpu.reciprocal %25 {approx = true} : vector<16x128xf32> -> vector<16x128xf32>
    %27 = arith.mulf %22, %26 : vector<16x128xf32>
    %cst_11 = arith.constant dense<0.000000e+00> : vector<16xf32>
    %28 = vector.multi_reduction <add>, %27, %cst_11 [1] : vector<16x128xf32> to vector<16xf32>
    %29 = vector.shape_cast %28 : vector<16xf32> to vector<16x1xf32>
    %cst_12 = arith.constant 9.99999996E-13 : f32
    %30 = vector.broadcast %cst_12 : f32 to vector<16x1xf32>
    %31 = arith.maximumf %29, %30 : vector<16x1xf32>
    %cst_13 = arith.constant 1.000000e+00 : f32
    %32 = vector.broadcast %cst_13 : f32 to vector<16x1xf32>
    %33 = arith.divf %32, %31 : vector<16x1xf32>
    %34 = vector.broadcast %33 : vector<16x1xf32> to vector<16x128xf32>
    %35 = arith.mulf %27, %34 : vector<16x128xf32>
    %36 = arith.truncf %35 : vector<16x128xf32> to vector<16x128xbf16>
    %c0_14 = arith.constant 0 : index
    %c0_15 = arith.constant 0 : index
    %37 = vector.load %arg7[%c0_14, %c0_15] : memref<16x128xbf16, #tpu.memory_space<vmem>>, vector<16x128xbf16>
    tpu.vector_store %arg7[%c0_14, %c0_15], %36 {strides = array<i32>} : memref<16x128xbf16, #tpu.memory_space<vmem>>, vector<16x128xbf16>,
    %38 = arith.truncf %35 : vector<16x128xf32> to vector<16x128xbf16>
    %c0_16 = arith.constant 0 : index
    %c0_17 = arith.constant 0 : index
    %39 = vector.load %arg4[%c0_16, %c0_17] : memref<128x128xbf16, #tpu.memory_space<vmem>>, vector<128x128xbf16>
    %cst_18 = arith.constant dense<0.000000e+00> : vector<16x128xf32>
    %40 = tpu.matmul %38, %39, %cst_18 {dimension_numbers = #tpu.dot_dimension_numbers<[1], [0], [0], [1], [0, 0, 1, 1], [], []>} : vector<16x128xbf16>, vector<128x128xbf16>, vector<16x128xf32> -> vector<16x128xf32>
    %c0_19 = arith.constant 0 : index
    %c0_20 = arith.constant 0 : index
    %41 = vector.load %arg5[%c0_19, %c0_20] : memref<1x128xf32, #tpu.memory_space<vmem>>, vector<1x128xf32>
    %42 = vector.broadcast %41 : vector<1x128xf32> to vector<16x128xf32>
    %43 = arith.addf %40, %42 : vector<16x128xf32>
    %44 = arith.truncf %43 : vector<16x128xf32> to vector<16x128xbf16>
    %c0_21 = arith.constant 0 : index
    %c0_22 = arith.constant 0 : index
    %45 = vector.load %arg6[%c0_21, %c0_22] : memref<16x128xbf16, #tpu.memory_space<vmem>>, vector<16x128xbf16>
    tpu.vector_store %arg6[%c0_21, %c0_22], %44 {strides = array<i32>} : memref<16x128xbf16, #tpu.memory_space<vmem>>, vector<16x128xbf16>,
    return
  }
  func.func @transform_0(%arg0: i32) -> (i32, i32) {
    %c0_i32 = arith.constant 0 : i32
    %c0_i32_0 = arith.constant 0 : i32
    return %arg0, %c0_i32 : i32, i32
  }
  func.func @transform_1(%arg0: i32) -> (i32, i32) {
    %c0_i32 = arith.constant 0 : i32
    %c0_i32_0 = arith.constant 0 : i32
    %c0_i32_1 = arith.constant 0 : i32
    return %c0_i32, %c0_i32_0 : i32, i32
  }
  func.func @transform_2(%arg0: i32) -> (i32, i32) {
    %c0_i32 = arith.constant 0 : i32
    %c0_i32_0 = arith.constant 0 : i32
    %c0_i32_1 = arith.constant 0 : i32
    return %c0_i32, %c0_i32_0 : i32, i32
  }
  func.func @transform_3(%arg0: i32) -> (i32, i32) {
    %c0_i32 = arith.constant 0 : i32
    %c0_i32_0 = arith.constant 0 : i32
    %c0_i32_1 = arith.constant 0 : i32
    return %c0_i32, %c0_i32_0 : i32, i32
  }
  func.func @transform_4(%arg0: i32) -> (i32, i32) {
    %c0_i32 = arith.constant 0 : i32
    %c0_i32_0 = arith.constant 0 : i32
    %c0_i32_1 = arith.constant 0 : i32
    return %c0_i32, %c0_i32_0 : i32, i32
  }
  func.func @transform_5(%arg0: i32) -> (i32, i32) {
    %c0_i32 = arith.constant 0 : i32
    %c0_i32_0 = arith.constant 0 : i32
    return %arg0, %c0_i32 : i32, i32
  }
  func.func @transform_6(%arg0: i32) -> (i32, i32) {
    %c0_i32 = arith.constant 0 : i32
    %c0_i32_0 = arith.constant 0 : i32
    return %arg0, %c0_i32 : i32, i32
  }
}

</mosaic_0001>

<llo_original>
// kernel: tpu_custom_call.1
$region0: #{tpu_custom_call.1}
  #allocation0 [shape = 'u32[]', space=smem, size = 0x4, offset = 0x4, fixed_abs, tag = 'smem constant byte address 0x4 - core index']
  #allocation1 [shape = 'u32[144,128]{1,0:T(1,128)}', space=vmem, size = 0x12000, scoped, tag = 'internal scratch']
  %s0 = inlined_call_operand.hbm [shape: f32[8,128], index: 0, kind: input, shape index: {}]
  %s1 = inlined_call_operand.hbm [shape: f32[16,128], index: 1, kind: input, shape index: {}]
  %s2 = inlined_call_operand.hbm [shape: f32[16,128], index: 2, kind: output, shape index: {}]
  %s3 = sld [smem:[#allocation0]]
  $region49: #{tpu_custom_call.1} parent=0
    _
  %s5 = ssub.s32 1, %s3
  %s6 = scalar_select 0, %s5, %s3
  $region1: #{tpu_custom_call.1} parent=0
    #allocation2 [shape = 'u8[4096]{0}', space=vmem, size = 0x1000, scoped, tag = 'input window, operand 0, single buffered']
    #allocation3 [shape = 's32[2]{0}', space=sflag, size = 0x8, scoped, tag = 'scoped memory for tpu_custom_call.1']
    #allocation4 [shape = 's32[2]{0}', space=sflag, size = 0x8, scoped, tag = 'scoped memory for tpu_custom_call.1']
    #allocation5 [shape = 'u8[8192]{0}', space=vmem, size = 0x2000, scoped, tag = 'input window, operand 1']
    #allocation6 [shape = 's32[2]{0}', space=sflag, size = 0x8, scoped, tag = 'scoped memory for tpu_custom_call.1']
    #allocation7 [shape = 'u8[8192]{0}', space=vmem, size = 0x2000, scoped, tag = 'output window, operand 0']
    %7 = vsyncpa [#allocation3], 0
    %8 = vsyncpa [#allocation6], 0
    %s9 = scalar_lea.sflag [#allocation6], 1
    %10 = vsyncpa %s9, 0
    %11 = vsyncpa [#allocation4], 0
    %s12 = scalar_lea.sflag [#allocation4], 1
    %13 = vsyncpa %s12, 0
    loop: start=0, step=1, limit=4
    $region2: #{tpu_custom_call.1} parent=1 // loop_pre_header
      _
    $region3: #{tpu_custom_call.1} parent=1 // loop_header
      %s15 = sphi 0, %s19
      %p16 = scmp.ge.s32.totalorder %s15, 4
      %s23 = sphi 0, %s23
      %s25 = sphi 0, %s23
      %s26 = sphi 0, %s25
      %s40 = sphi 0, %s26
      %s46 = sphi 0, %s48
      %s49 = sphi 0, %s46
      %s50 = sphi 0, %s49
      %s66 = sphi 0, %s50
      %s72 = sphi 0, %s74
      %s75 = sphi 0, %s72
      %s76 = sphi 0, %s75
      %s92 = sphi 0, %s76
    $region4: #{tpu_custom_call.1} parent=1 // loop_header_branch
      %18 = sbr.rel (%p16) target = $region8
    $region5: #{tpu_custom_call.1} parent=1 // loop_body
      %s20 = ssub.s32 %s15, 1
      %s21 = ssub.s32 %s15, 2
      %s22 = sadd.s32 %s15, 1
      %s24 = sadd.s32 %s23, 1
      %p27 = scmp.eq.s32.totalorder %s15, 1
      %p28 = scmp.ne.s32.totalorder %s23, %s25
      %p29 = scmp.eq.s32.totalorder %s15, 0
      %p30 = por %p28, %p29
      %p31 = scmp.ne.s32.totalorder %s23, %s25
      %p32 = scmp.eq.s32.totalorder %s20, 1
      %p33 = por %p31, %p32
      %p34 = scmp.ne.s32.totalorder %s25, %s26
      %p35 = scmp.eq.s32.totalorder %s20, 0
      %p36 = por %p34, %p35
      %p37 = scmp.ne.s32.totalorder %s25, %s26
      %p38 = scmp.eq.s32.totalorder %s21, 1
      %p39 = por %p37, %p38
      %p41 = scmp.ne.s32.totalorder %s26, %s40
      %p42 = scmp.eq.s32.totalorder %s21, 0
      %p43 = por %p41, %p42
      %s44 = ssub.s32 %s15, %s22
      %p45 = scmp.eq.s32.totalorder %s44, 0
      %s47 = sadd.s32 %s46, 1
      %s48 = scalar_select %p45, %s46, %s47
      %p51 = pneg %p45
      %p52 = scmp.eq.s32.totalorder %s15, 1
      %p53 = por %p51, %p52
      %p54 = scmp.ne.s32.totalorder %s46, %s49
      %p55 = scmp.eq.s32.totalorder %s15, 0
      %p56 = por %p54, %p55
      %p57 = scmp.ne.s32.totalorder %s46, %s49
      %p58 = scmp.eq.s32.totalorder %s20, 1
      %p59 = por %p57, %p58
      %p60 = scmp.ne.s32.totalorder %s49, %s50
      %p61 = scmp.eq.s32.totalorder %s20, 0
      %p62 = por %p60, %p61
      %p63 = scmp.ne.s32.totalorder %s49, %s50
      %p64 = scmp.eq.s32.totalorder %s21, 1
      %p65 = por %p63, %p64
      %p67 = scmp.ne.s32.totalorder %s50, %s66
      %p68 = scmp.eq.s32.totalorder %s21, 0
      %p69 = por %p67, %p68
      %s70 = ssub.s32 %s15, %s22
      %p71 = scmp.eq.s32.totalorder %s70, 0
      %s73 = sadd.s32 %s72, 1
      %s74 = scalar_select %p71, %s72, %s73
      %p77 = pneg %p71
      %p78 = scmp.eq.s32.totalorder %s15, 1
      %p79 = por %p77, %p78
      %p80 = scmp.ne.s32.totalorder %s72, %s75
      %p81 = scmp.eq.s32.totalorder %s15, 0
      %p82 = por %p80, %p81
      %p83 = scmp.ne.s32.totalorder %s72, %s75
      %p84 = scmp.eq.s32.totalorder %s20, 1
      %p85 = por %p83, %p84
      %p86 = scmp.ne.s32.totalorder %s75, %s76
      %p87 = scmp.eq.s32.totalorder %s20, 0
      %p88 = por %p86, %p87
      %p89 = scmp.ne.s32.totalorder %s75, %s76
      %p90 = scmp.eq.s32.totalorder %s21, 1
      %p91 = por %p89, %p90
      %p93 = scmp.ne.s32.totalorder %s76, %s92
      %p94 = scmp.eq.s32.totalorder %s21, 0
      %p95 = por %p93, %p94
      %p96 = scmp.le.s32.totalorder 1, %s15
      %p97 = scmp.lt.s32.totalorder %s15, 3
      %p98 = pnand %p96, %p97
      %p99 = pneg %p98
      // Predicated region
      $region9: #{tpu_custom_call.1} parent=5 // pred_check
        _
      $region10: #{tpu_custom_call.1} parent=5 // pred_check_branch
        %101 = sbr.rel (%p98) target = $region12
      $region11: #{tpu_custom_call.1} parent=5 // pred_region
        %s102 = ssub.s32 %s15, 1
        // Predicated region
        $region13: #{tpu_custom_call.1} parent=11 // pred_check
          %p103 = pneg %p36
        $region14: #{tpu_custom_call.1} parent=11 // pred_check_branch
          %105 = sbr.rel (%p103) target = $region16
        $region15: #{tpu_custom_call.1} parent=11 // pred_region
          %s107 = ssub.s32 128, 128
          %108 = vsyncadd [#allocation3], %s107
          %s110 = sshll.u32 [#allocation2], 4
          %s111 = int_to_ptr.vmem [resolvable:$true] %s110
          %113 = dma.hbm_to_vmem [thread:$0]  %s0, 128, %s111, [#allocation3]
        $region16: #{tpu_custom_call.1} parent=11 // pred_fallthru
          _
      $region12: #{tpu_custom_call.1} parent=5 // pred_fallthru
        _
      %p114 = scmp.lt.s32.totalorder %s15, 2
      // Predicated region
      $region17: #{tpu_custom_call.1} parent=5 // pred_check
        %p115 = pneg %p114
      $region18: #{tpu_custom_call.1} parent=5 // pred_check_branch
        %117 = sbr.rel (%p115) target = $region20
      $region19: #{tpu_custom_call.1} parent=5 // pred_region
        // Predicated region
        $region21: #{tpu_custom_call.1} parent=19 // pred_check
          %p118 = pneg %p56
        $region22: #{tpu_custom_call.1} parent=19 // pred_check_branch
          %120 = sbr.rel (%p118) target = $region24
        $region23: #{tpu_custom_call.1} parent=19 // pred_region
          %s121 = sand.u32 %s46, 1
          %s122 = scalar_lea.sflag [#allocation6], %s121
          %s123 = sand.u32 %s46, 1
          %s124 = smul.addr %s123, 8
          %s125 = scalar_lea.vmem [#allocation5], %s124
          %s127 = ssub.s32 128, 128
          %128 = vsyncadd %s122, %s127
          %s129 = smul.addr %s15, 128
          %s130 = scalar_lea.hbm %s1, %s129
          %s132 = sshll.u32 %s125, 4
          %s133 = int_to_ptr.vmem [resolvable:$true] %s132
          %135 = dma.hbm_to_vmem [thread:$0]  %s130, 128, %s133, %s122
        $region24: #{tpu_custom_call.1} parent=19 // pred_fallthru
          _
      $region20: #{tpu_custom_call.1} parent=5 // pred_fallthru
        _
      %p136 = scmp.le.s32.totalorder 1, %s15
      %p137 = scmp.lt.s32.totalorder %s15, 3
      %p138 = pnand %p136, %p137
      %p139 = pneg %p138
      // Predicated region
      $region25: #{tpu_custom_call.1} parent=5 // pred_check
        _
      $region26: #{tpu_custom_call.1} parent=5 // pred_check_branch
        %141 = sbr.rel (%p138) target = $region28
      $region27: #{tpu_custom_call.1} parent=5 // pred_region
        %s142 = ssub.s32 %s15, 1
        // Predicated region
        $region29: #{tpu_custom_call.1} parent=27 // pred_check
          %p143 = pneg %p36
        $region30: #{tpu_custom_call.1} parent=27 // pred_check_branch
          %145 = sbr.rel (%p143) target = $region32
        $region31: #{tpu_custom_call.1} parent=27 // pred_region
          %146 = dma.done [#allocation3], 128
        $region32: #{tpu_custom_call.1} parent=27 // pred_fallthru
          _
        %s147 = sand.u32 %s49, 1
        %s148 = scalar_lea.sflag [#allocation6], %s147
        %s149 = sand.u32 %s49, 1
        %s150 = smul.addr %s149, 8
        %s151 = scalar_lea.vmem [#allocation5], %s150
        // Predicated region
        $region33: #{tpu_custom_call.1} parent=27 // pred_check
          %p152 = pneg %p62
        $region34: #{tpu_custom_call.1} parent=27 // pred_check_branch
          %154 = sbr.rel (%p152) target = $region36
        $region35: #{tpu_custom_call.1} parent=27 // pred_region
          %155 = dma.done %s148, 128
        $region36: #{tpu_custom_call.1} parent=27 // pred_fallthru
          _
        %p156 = pneg %p36
        %p157 = pneg %p33
        %s158 = sand.u32 %s49, 1
        %s159 = scalar_lea.sflag [#allocation6], %s158
        %s160 = sand.u32 %s49, 1
        %s161 = smul.addr %s160, 8
        %s162 = scalar_lea.vmem [#allocation5], %s161
        %p163 = pneg %p62
        %p164 = pneg %p59
        %p165 = pneg %p88
        %p166 = pneg %p85
        %s167 = sand.u32 %s75, 1
        %s168 = scalar_lea.sflag [#allocation4], %s167
        %s169 = sand.u32 %s75, 1
        %s170 = smul.addr %s169, 8
        %s171 = scalar_lea.vmem [#allocation7], %s170
        %v172 = vld [vmem:[%s151] sm:$0xff]
        %v173 = vld [vmem:[#allocation2] sm:$0xff]
        %v174 = vadd.f32 %v172, %v173
        %175 = vst [vmem:[%s171] sm:$0xff] %v174
        %s176 = sand.u32 %s75, 1
        %s177 = scalar_lea.sflag [#allocation4], %s176
        %s178 = sand.u32 %s75, 1
        %s179 = smul.addr %s178, 8
        %s180 = scalar_lea.vmem [#allocation7], %s179
        // Predicated region
        $region37: #{tpu_custom_call.1} parent=27 // pred_check
          %p181 = pneg %p85
        $region38: #{tpu_custom_call.1} parent=27 // pred_check_branch
          %183 = sbr.rel (%p181) target = $region40
        $region39: #{tpu_custom_call.1} parent=27 // pred_region
          %s185 = ssub.s32 128, 128
          %186 = vsyncadd %s177, %s185
          %s187 = smul.addr %s20, 128
          %s188 = scalar_lea.hbm %s2, %s187
          %s190 = sshll.u32 %s180, 4
          %s191 = int_to_ptr.vmem [resolvable:$true] %s190
          %193 = dma.vmem_to_hbm [thread:$0]  %s191, 128, %s188, %s177
        $region40: #{tpu_custom_call.1} parent=27 // pred_fallthru
          _
      $region28: #{tpu_custom_call.1} parent=5 // pred_fallthru
        _
      %p194 = scmp.le.s32.totalorder 2, %s15
      // Predicated region
      $region41: #{tpu_custom_call.1} parent=5 // pred_check
        %p195 = pneg %p194
      $region42: #{tpu_custom_call.1} parent=5 // pred_check_branch
        %197 = sbr.rel (%p195) target = $region44
      $region43: #{tpu_custom_call.1} parent=5 // pred_region
        %s198 = ssub.s32 %s15, 2
        // Predicated region
        $region45: #{tpu_custom_call.1} parent=43 // pred_check
          %p199 = pneg %p91
        $region46: #{tpu_custom_call.1} parent=43 // pred_check_branch
          %201 = sbr.rel (%p199) target = $region48
        $region47: #{tpu_custom_call.1} parent=43 // pred_region
          %s202 = sand.u32 %s76, 1
          %s203 = scalar_lea.sflag [#allocation4], %s202
          %s204 = sand.u32 %s76, 1
          %s205 = smul.addr %s204, 8
          %s206 = scalar_lea.vmem [#allocation7], %s205
          %207 = dma.done %s203, 128
        $region48: #{tpu_custom_call.1} parent=43 // pred_fallthru
          _
      $region44: #{tpu_custom_call.1} parent=5 // pred_fallthru
        _
    $region6: #{tpu_custom_call.1} parent=1 // loop_footer
      %s19 = sadd.s32 1, %s15
    $region7: #{tpu_custom_call.1} parent=1 // loop_footer_branch
      %14 = sbr.rel target = $region3
    $region8: #{tpu_custom_call.1} parent=1 // loop_exit
      _
    %208 = vsyncpa [#allocation3], 1
    %s209 = scalar_lea.sflag [#allocation3], 1
    %210 = vsyncpa %s209, 1
    %211 = vsyncpa [#allocation6], 1
    %s212 = scalar_lea.sflag [#allocation6], 1
    %213 = vsyncpa %s212, 1
    %214 = vsyncpa [#allocation4], 1
    %s215 = scalar_lea.sflag [#allocation4], 1
    %216 = vsyncpa %s215, 1

// kernel: tpu_custom_call.1
$region0: #{tpu_custom_call.1}
  #allocation0 [shape = 'u32[]', space=smem, size = 0x4, offset = 0x4, fixed_abs, tag = 'smem constant byte address 0x4 - core index']
  #allocation1 [shape = 'u32[144,128]{1,0:T(1,128)}', space=vmem, size = 0x12000, scoped, tag = 'internal scratch']
  %s0 = inlined_call_operand.hbm [shape: f32[16,128], index: 0, kind: input, shape index: {}]
  %s1 = inlined_call_operand.hbm [shape: bf16[128,128], index: 1, kind: input, shape index: {}]
  %s2 = inlined_call_operand.vmem [shape: f32[1,128], index: 2, kind: input, shape index: {}]
  %s3 = inlined_call_operand.hbm [shape: bf16[128,128], index: 3, kind: input, shape index: {}]
  %s4 = inlined_call_operand.vmem [shape: f32[1,128], index: 4, kind: input, shape index: {}]
  %s5 = inlined_call_operand.hbm [shape: bf16[16,128], index: 5, kind: output, shape index: {0}]
  %s6 = inlined_call_operand.hbm [shape: bf16[16,128], index: 6, kind: output, shape index: {1}]
  %7 = xla_tuple %s5, %s6
  %s8 = sld [smem:[#allocation0]]
  $region50: #{tpu_custom_call.1} parent=0
    _
  %s10 = ssub.s32 1, %s8
  %s11 = scalar_select 0, %s10, %s8
  $region1: #{tpu_custom_call.1} parent=0
    #allocation2 [shape = 'u8[8192]{0}', space=vmem, size = 0x2000, scoped, tag = 'input window, operand 0, single buffered']
    #allocation3 [shape = 's32[1]{0}', space=sflag, size = 0x4, scoped, tag = 'scoped memory for tpu_custom_call.1']
    #allocation4 [shape = 's32[1]{0}', space=sflag, size = 0x4, scoped, tag = 'scoped memory for tpu_custom_call.1']
    #allocation5 [shape = 'u8[32768]{0}', space=vmem, size = 0x8000, scoped, tag = 'input window, operand 1, single buffered']
    #allocation6 [shape = 's32[1]{0}', space=sflag, size = 0x4, scoped, tag = 'scoped memory for tpu_custom_call.1']
    #allocation7 [shape = 'u8[32768]{0}', space=vmem, size = 0x8000, scoped, tag = 'input window, operand 3, single buffered']
    #allocation8 [shape = 'u8[4096]{0}', space=vmem, size = 0x1000, scoped, tag = 'output window, operand 0, single buffered']
    #allocation9 [shape = 'u8[4096]{0}', space=vmem, size = 0x1000, scoped, tag = 'output window, operand 1, single buffered']
    #allocation10 [shape = 's32[1]{0}', space=sflag, size = 0x4, scoped, tag = 'scoped memory for tpu_custom_call.1']
    %12 = vsyncpa [#allocation3], 0
    %13 = vsyncpa [#allocation6], 0
    %14 = vsyncpa [#allocation4], 0
    %15 = vsyncpa [#allocation10], 0
    // Predicated region
    $region2: #{tpu_custom_call.1} parent=1 // pred_check
      _
    $region3: #{tpu_custom_call.1} parent=1 // pred_check_branch
      %17 = sbr.rel (0) target = $region5
    $region4: #{tpu_custom_call.1} parent=1 // pred_region
      %s19 = ssub.s32 256, 256
      %20 = vsyncadd [#allocation3], %s19
      %s21 = sshll.u32 [#allocation2], 4
      %s22 = int_to_ptr.vmem [resolvable:$true] %s21
      %27 = dma.hbm_to_vmem [thread:$0]  %s0, 256, %s22, [#allocation3], 128, 128, 8
    $region5: #{tpu_custom_call.1} parent=1 // pred_fallthru
      _
    // Predicated region
    $region6: #{tpu_custom_call.1} parent=1 // pred_check
      _
    $region7: #{tpu_custom_call.1} parent=1 // pred_check_branch
      %29 = sbr.rel (0) target = $region9
    $region8: #{tpu_custom_call.1} parent=1 // pred_region
      %s31 = ssub.s32 1024, 1024
      %32 = vsyncadd [#allocation6], %s31
      %s33 = sshll.u32 [#allocation5], 4
      %s34 = int_to_ptr.vmem [resolvable:$true] %s33
      %39 = dma.hbm_to_vmem [thread:$0]  %s1, 1024, %s34, [#allocation6], 64, 64, 4
    $region9: #{tpu_custom_call.1} parent=1 // pred_fallthru
      _
    // Predicated region
    $region10: #{tpu_custom_call.1} parent=1 // pred_check
      _
    $region11: #{tpu_custom_call.1} parent=1 // pred_check_branch
      %41 = sbr.rel (0) target = $region13
    $region12: #{tpu_custom_call.1} parent=1 // pred_region
      _
    $region13: #{tpu_custom_call.1} parent=1 // pred_fallthru
      _
    // Predicated region
    $region14: #{tpu_custom_call.1} parent=1 // pred_check
      _
    $region15: #{tpu_custom_call.1} parent=1 // pred_check_branch
      %43 = sbr.rel (0) target = $region17
    $region16: #{tpu_custom_call.1} parent=1 // pred_region
      %s45 = ssub.s32 1024, 1024
      %46 = vsyncadd [#allocation6], %s45
      %s47 = sshll.u32 [#allocation7], 4
      %s48 = int_to_ptr.vmem [resolvable:$true] %s47
      %53 = dma.hbm_to_vmem [thread:$0]  %s3, 1024, %s48, [#allocation6], 64, 64, 4
    $region17: #{tpu_custom_call.1} parent=1 // pred_fallthru
      _
    // Predicated region
    $region18: #{tpu_custom_call.1} parent=1 // pred_check
      _
    $region19: #{tpu_custom_call.1} parent=1 // pred_check_branch
      %55 = sbr.rel (0) target = $region21
    $region20: #{tpu_custom_call.1} parent=1 // pred_region
      _
    $region21: #{tpu_custom_call.1} parent=1 // pred_fallthru
      _
    // Predicated region
    $region22: #{tpu_custom_call.1} parent=1 // pred_check
      _
    $region23: #{tpu_custom_call.1} parent=1 // pred_check_branch
      %57 = sbr.rel (0) target = $region25
    $region24: #{tpu_custom_call.1} parent=1 // pred_region
      %58 = dma.done [#allocation3], 256
    $region25: #{tpu_custom_call.1} parent=1 // pred_fallthru
      _
    // Predicated region
    $region26: #{tpu_custom_call.1} parent=1 // pred_check
      _
    $region27: #{tpu_custom_call.1} parent=1 // pred_check_branch
      %60 = sbr.rel (0) target = $region29
    $region28: #{tpu_custom_call.1} parent=1 // pred_region
      %61 = dma.done [#allocation6], 1024
    $region29: #{tpu_custom_call.1} parent=1 // pred_fallthru
      _
    // Predicated region
    $region30: #{tpu_custom_call.1} parent=1 // pred_check
      _
    $region31: #{tpu_custom_call.1} parent=1 // pred_check_branch
      %63 = sbr.rel (0) target = $region33
    $region32: #{tpu_custom_call.1} parent=1 // pred_region
      %64 = dma.done [#allocation6], 1024
    $region33: #{tpu_custom_call.1} parent=1 // pred_fallthru
      _
    %v66 = vld [vmem:[#allocation2] sm:$0xff]
    %v67 = vld [vmem:[#allocation2 + $0x8] sm:$0xff]
    %v68 = vpack.c.bf16 %v67, %v66
    %v69 = vld [vmem:[#allocation5] sm:$0xf]
    %v70 = vld [vmem:[#allocation5 + $0x4] sm:$0xf]
    %v71 = vld [vmem:[#allocation5 + $0x8] sm:$0xf]
    %v72 = vld [vmem:[#allocation5 + $0xc] sm:$0xf]
    %v73 = vld [vmem:[#allocation5 + $0x10] sm:$0xf]
    %v74 = vld [vmem:[#allocation5 + $0x14] sm:$0xf]
    %v75 = vld [vmem:[#allocation5 + $0x18] sm:$0xf]
    %v76 = vld [vmem:[#allocation5 + $0x1c] sm:$0xf]
    %v77 = vld [vmem:[#allocation5 + $0x20] sm:$0xf]
    %v78 = vld [vmem:[#allocation5 + $0x24] sm:$0xf]
    %v79 = vld [vmem:[#allocation5 + $0x28] sm:$0xf]
    %v80 = vld [vmem:[#allocation5 + $0x2c] sm:$0xf]
    %v81 = vld [vmem:[#allocation5 + $0x30] sm:$0xf]
    %v82 = vld [vmem:[#allocation5 + $0x34] sm:$0xf]
    %v83 = vld [vmem:[#allocation5 + $0x38] sm:$0xf]
    %v84 = vld [vmem:[#allocation5 + $0x3c] sm:$0xf]
    %v85 = vld [vmem:[%s2] sm:$0x1]
    %v87 = vlaneseq
    %v88 = vshrl.u32 %v87, 7
    %v89 = vsub.s32 0, %v88
    %v90 = vrot.slane %v85, %v89
    %v108 = vunpack.c.l.b16 %v69
    %v109 = vunpack.c.l.b16 %v70
    %v110 = vunpack.c.l.b16 %v71
    %v111 = vunpack.c.l.b16 %v72
    %v112 = vunpack.c.l.b16 %v73
    %v113 = vunpack.c.l.b16 %v74
    %v114 = vunpack.c.l.b16 %v75
    %v115 = vunpack.c.l.b16 %v76
    %v116 = vunpack.c.l.b16 %v77
    %v117 = vunpack.c.l.b16 %v78
    %v118 = vunpack.c.l.b16 %v79
    %v119 = vunpack.c.l.b16 %v80
    %v120 = vunpack.c.l.b16 %v81
    %v121 = vunpack.c.l.b16 %v82
    %v122 = vunpack.c.l.b16 %v83
    %v123 = vunpack.c.l.b16 %v84
    %v124 = vpack.c.b16 %v109, %v108
    %v125 = vpack.c.b16 %v111, %v110
    %v126 = vpack.c.b16 %v113, %v112
    %v127 = vpack.c.b16 %v115, %v114
    %v128 = vpack.c.b16 %v117, %v116
    %v129 = vpack.c.b16 %v119, %v118
    %v130 = vpack.c.b16 %v121, %v120
    %v131 = vpack.c.b16 %v123, %v122
    %140 = vmatprep.subr.bf16.mxu0 0
    %141 = vmatpush1.bf16.msra.mxu0 %v131
    %142 = vmatprep.subr.bf16.mxu0 0
    %143 = vmatpush1.bf16.msra.mxu0 %v130
    %144 = vmatprep.subr.bf16.mxu0 0
    %145 = vmatpush1.bf16.msra.mxu0 %v129
    %146 = vmatprep.subr.bf16.mxu0 0
    %147 = vmatpush1.bf16.msra.mxu0 %v128
    %148 = vmatprep.subr.bf16.mxu0 0
    %149 = vmatpush1.bf16.msra.mxu0 %v127
    %150 = vmatprep.subr.bf16.mxu0 0
    %151 = vmatpush1.bf16.msra.mxu0 %v126
    %152 = vmatprep.subr.bf16.mxu0 0
    %153 = vmatpush1.bf16.msra.mxu0 %v125
    %154 = vmatprep.subr.bf16.mxu0 0
    %155 = vmatpush1.bf16.msra.mxu0 %v124
    %156 = vmatprep.subr.bf16.mxu0 0
    %157 = vmatpush2.bf16.msra.mxu0 0
    %158 = vmatprep.subr.bf16.mxu0 0
    %159 = vmatpush2.bf16.msra.mxu0 0
    %160 = vmatprep.subr.bf16.mxu0 0
    %161 = vmatpush2.bf16.msra.mxu0 0
    %162 = vmatprep.subr.bf16.mxu0 0
    %163 = vmatpush2.bf16.msra.mxu0 0
    %164 = vmatprep.subr.bf16.mxu0 0
    %165 = vmatpush2.bf16.msra.mxu0 0
    %166 = vmatprep.subr.bf16.mxu0 0
    %167 = vmatpush2.bf16.msra.mxu0 0
    %168 = vmatprep.subr.bf16.mxu0 0
    %169 = vmatpush2.bf16.msra.mxu0 0
    %170 = vmatprep.subr.bf16.mxu0 0
    %171 = vmatpush2.bf16.msra.mxu0 0
    %172 = vmatprep.mubr.bf16.mxu0 0
    %173 = vmatmul.mubr.bf16.gmra.mxu0 %v68
    %v174 = vpop.f32.mrf.mxu0
    %v175 = vadd.f32 %v90, %v174
    %v176 = vpop.f32.mrf.mxu0
    %v177 = vpop.f32.mrf.mxu0
    %v178 = vadd.f32 %v90, %v177
    %v179 = vpop.f32.mrf.mxu0
    %180 = vdwg.mxu0
    %181 = vmax.xlane.f32.xlu0 %v175
    %v182 = vpop.xlane.xlu0 %181
    %183 = vmax.xlane.f32.xlu0 %v178
    %v184 = vpop.xlane.xlu0 %183
    %v185 = vsub.f32 %v175, %v182
    %v186 = vsub.f32 %v178, %v184
    %v187 = vmul.f32 %v185, 1.442695
    %v188 = vpow.pop %v187
    %v189 = vmul.f32 %v186, 1.442695
    %v190 = vpow.pop %v189
    %191 = vadd.xlane.f32.xlu0 %v188
    %v192 = vpop.xlane.xlu0 %191
    %193 = vadd.xlane.f32.xlu0 %v190
    %v194 = vpop.xlane.xlu0 %193
    %v195 = vrcp.pop %v192
    %v196 = vmul.f32 1.0, %v195
    %v197 = vrcp.pop %v194
    %v198 = vmul.f32 1.0, %v197
    %v199 = vmul.f32 %v188, %v196
    %v200 = vmul.f32 %v190, %v198
    %v201 = vsub.f32 %v199, 0.0025
    %v202 = vsub.f32 %v200, 0.0025
    %v203 = vmax.f32 %v201, 0.0
    %v204 = vmax.f32 %v202, 0.0
    %v205 = vmul.f32 %v203, %v199
    %v206 = vmul.f32 %v204, %v200
    %v207 = vand.u32 2147483647, %v201
    %v208 = vand.u32 2147483647, %v202
    %v209 = vadd.f32 %v207, 1e-12
    %v210 = vadd.f32 %v208, 1e-12
    %v211 = vrcp.pop %v209
    %v212 = vrcp.pop %v210
    %v213 = vmul.f32 %v205, %v211
    %v214 = vmul.f32 %v206, %v212
    %215 = vadd.xlane.f32.xlu0 %v213
    %v216 = vpop.xlane.xlu0 %215
    %217 = vadd.xlane.f32.xlu0 %v214
    %v218 = vpop.xlane.xlu0 %217
    %v219 = vmax.f32 %v216, 1e-12
    %v220 = vmax.f32 %v218, 1e-12
    %v221 = vrcp.pop %v219
    %v222 = vmul.f32 1.0, %v221
    %v223 = vrcp.pop %v220
    %v224 = vmul.f32 1.0, %v223
    %v225 = vmul.f32 %v213, %v222
    %v226 = vmul.f32 %v214, %v224
    %v227 = vpack.c.bf16 %v226, %v225
    %v229 = vunpack.c.l.b16 %v227
    %v230 = vunpack.c.h.b16 %v227
    %v231 = vpack.c.b16 %v229, %v229
    %v232 = vpack.c.b16 %v230, %v230
    %235 = vst [vmem:[#allocation9] sm:$0xf] %v231
    %236 = vst [vmem:[#allocation9 + $0x4] sm:$0xf] %v232
    %v237 = vld [vmem:[#allocation7] sm:$0xf]
    %v238 = vld [vmem:[#allocation7 + $0x4] sm:$0xf]
    %v239 = vld [vmem:[#allocation7 + $0x8] sm:$0xf]
    %v240 = vld [vmem:[#allocation7 + $0xc] sm:$0xf]
    %v241 = vld [vmem:[#allocation7 + $0x10] sm:$0xf]
    %v242 = vld [vmem:[#allocation7 + $0x14] sm:$0xf]
    %v243 = vld [vmem:[#allocation7 + $0x18] sm:$0xf]
    %v244 = vld [vmem:[#allocation7 + $0x1c] sm:$0xf]
    %v245 = vld [vmem:[#allocation7 + $0x20] sm:$0xf]
    %v246 = vld [vmem:[#allocation7 + $0x24] sm:$0xf]
    %v247 = vld [vmem:[#allocation7 + $0x28] sm:$0xf]
    %v248 = vld [vmem:[#allocation7 + $0x2c] sm:$0xf]
    %v249 = vld [vmem:[#allocation7 + $0x30] sm:$0xf]
    %v250 = vld [vmem:[#allocation7 + $0x34] sm:$0xf]
    %v251 = vld [vmem:[#allocation7 + $0x38] sm:$0xf]
    %v252 = vld [vmem:[#allocation7 + $0x3c] sm:$0xf]
    %v253 = vld [vmem:[%s4] sm:$0x1]
    %v255 = vlaneseq
    %v256 = vshrl.u32 %v255, 7
    %v257 = vsub.s32 0, %v256
    %v258 = vrot.slane %v253, %v257
    %v276 = vunpack.c.l.b16 %v237
    %v277 = vunpack.c.l.b16 %v238
    %v278 = vunpack.c.l.b16 %v239
    %v279 = vunpack.c.l.b16 %v240
    %v280 = vunpack.c.l.b16 %v241
    %v281 = vunpack.c.l.b16 %v242
    %v282 = vunpack.c.l.b16 %v243
    %v283 = vunpack.c.l.b16 %v244
    %v284 = vunpack.c.l.b16 %v245
    %v285 = vunpack.c.l.b16 %v246
    %v286 = vunpack.c.l.b16 %v247
    %v287 = vunpack.c.l.b16 %v248
    %v288 = vunpack.c.l.b16 %v249
    %v289 = vunpack.c.l.b16 %v250
    %v290 = vunpack.c.l.b16 %v251
    %v291 = vunpack.c.l.b16 %v252
    %v292 = vpack.c.b16 %v277, %v276
    %v293 = vpack.c.b16 %v279, %v278
    %v294 = vpack.c.b16 %v281, %v280
    %v295 = vpack.c.b16 %v283, %v282
    %v296 = vpack.c.b16 %v285, %v284
    %v297 = vpack.c.b16 %v287, %v286
    %v298 = vpack.c.b16 %v289, %v288
    %v299 = vpack.c.b16 %v291, %v290
    %308 = vmatprep.subr.bf16.mxu0 0
    %309 = vmatpush1.bf16.msra.mxu0 %v299
    %310 = vmatprep.subr.bf16.mxu0 0
    %311 = vmatpush1.bf16.msra.mxu0 %v298
    %312 = vmatprep.subr.bf16.mxu0 0
    %313 = vmatpush1.bf16.msra.mxu0 %v297
    %314 = vmatprep.subr.bf16.mxu0 0
    %315 = vmatpush1.bf16.msra.mxu0 %v296
    %316 = vmatprep.subr.bf16.mxu0 0
    %317 = vmatpush1.bf16.msra.mxu0 %v295
    %318 = vmatprep.subr.bf16.mxu0 0
    %319 = vmatpush1.bf16.msra.mxu0 %v294
    %320 = vmatprep.subr.bf16.mxu0 0
    %321 = vmatpush1.bf16.msra.mxu0 %v293
    %322 = vmatprep.subr.bf16.mxu0 0
    %323 = vmatpush1.bf16.msra.mxu0 %v292
    %324 = vmatprep.subr.bf16.mxu0 0
    %325 = vmatpush2.bf16.msra.mxu0 0
    %326 = vmatprep.subr.bf16.mxu0 0
    %327 = vmatpush2.bf16.msra.mxu0 0
    %328 = vmatprep.subr.bf16.mxu0 0
    %329 = vmatpush2.bf16.msra.mxu0 0
    %330 = vmatprep.subr.bf16.mxu0 0
    %331 = vmatpush2.bf16.msra.mxu0 0
    %332 = vmatprep.subr.bf16.mxu0 0
    %333 = vmatpush2.bf16.msra.mxu0 0
    %334 = vmatprep.subr.bf16.mxu0 0
    %335 = vmatpush2.bf16.msra.mxu0 0
    %336 = vmatprep.subr.bf16.mxu0 0
    %337 = vmatpush2.bf16.msra.mxu0 0
    %338 = vmatprep.subr.bf16.mxu0 0
    %339 = vmatpush2.bf16.msra.mxu0 0
    %340 = vmatprep.mubr.bf16.mxu0 0
    %341 = vmatmul.mubr.bf16.gmra.mxu0 %v227
    %v342 = vpop.f32.mrf.mxu0
    %v343 = vadd.f32 %v258, %v342
    %v344 = vpop.f32.mrf.mxu0
    %v345 = vpop.f32.mrf.mxu0
    %v346 = vadd.f32 %v258, %v345
    %v347 = vpop.f32.mrf.mxu0
    %348 = vdwg.mxu0
    %v349 = vpack.c.bf16 %v346, %v343
    %v351 = vunpack.c.l.b16 %v349
    %v352 = vunpack.c.h.b16 %v349
    %v353 = vpack.c.b16 %v351, %v351
    %v354 = vpack.c.b16 %v352, %v352
    %357 = vst [vmem:[#allocation8] sm:$0xf] %v353
    %358 = vst [vmem:[#allocation8 + $0x4] sm:$0xf] %v354
    // Predicated region
    $region34: #{tpu_custom_call.1} parent=1 // pred_check
      _
    $region35: #{tpu_custom_call.1} parent=1 // pred_check_branch
      %360 = sbr.rel (0) target = $region37
    $region36: #{tpu_custom_call.1} parent=1 // pred_region
      %s362 = ssub.s32 128, 128
      %363 = vsyncadd [#allocation4], %s362
      %s364 = sshll.u32 [#allocation8], 4
      %s365 = int_to_ptr.vmem [resolvable:$true] %s364
      %370 = dma.vmem_to_hbm [thread:$0]  %s365, 128, %s5, [#allocation4], 64, 64, 4
    $region37: #{tpu_custom_call.1} parent=1 // pred_fallthru
      _
    // Predicated region
    $region38: #{tpu_custom_call.1} parent=1 // pred_check
      _
    $region39: #{tpu_custom_call.1} parent=1 // pred_check_branch
      %372 = sbr.rel (0) target = $region41
    $region40: #{tpu_custom_call.1} parent=1 // pred_region
      %s374 = ssub.s32 128, 128
      %375 = vsyncadd [#allocation10], %s374
      %s376 = sshll.u32 [#allocation9], 4
      %s377 = int_to_ptr.vmem [resolvable:$true] %s376
      %382 = dma.vmem_to_hbm [thread:$0]  %s377, 128, %s6, [#allocation10], 64, 64, 4
    $region41: #{tpu_custom_call.1} parent=1 // pred_fallthru
      _
    // Predicated region
    $region42: #{tpu_custom_call.1} parent=1 // pred_check
      _
    $region43: #{tpu_custom_call.1} parent=1 // pred_check_branch
      %384 = sbr.rel (0) target = $region45
    $region44: #{tpu_custom_call.1} parent=1 // pred_region
      %385 = dma.done [#allocation4], 128
    $region45: #{tpu_custom_call.1} parent=1 // pred_fallthru
      _
    // Predicated region
    $region46: #{tpu_custom_call.1} parent=1 // pred_check
      _
    $region47: #{tpu_custom_call.1} parent=1 // pred_check_branch
      %387 = sbr.rel (0) target = $region49
    $region48: #{tpu_custom_call.1} parent=1 // pred_region
      %388 = dma.done [#allocation10], 128
    $region49: #{tpu_custom_call.1} parent=1 // pred_fallthru
      _
    %389 = vsyncpa [#allocation3], 1
    %390 = vsyncpa [#allocation6], 1
    %391 = vsyncpa [#allocation4], 1
    %392 = vsyncpa [#allocation10], 1

</llo_original>
